<compile_context>
chip_gen: v7x
topology: tpu7x:2x2x1
jax: 0.10.0
libtpu: 0.0.40
codegen_flags: <defaults>
</compile_context>

<pallas_src>
import jax
import jax.numpy as jnp
from jax.experimental import pallas as pl
from jax.experimental.pallas import tpu as pltpu

_LANES = 128
_SUBLANE_MULTIPLE = 32            # keeps bf16/int8 sublane packing legal
_SINGLE_BLOCK_MAX_ROWS = 2048     # <= 1 MiB f32: one full-extent block
_FAST_PATH_MAX_BYTES = 64 * 1024  # below this, let XLA fuse the jnp version


def _squared_relu_ref(x: jax.Array) -> jax.Array:
    # dtype-safe zero (a weak 0.0 literal would promote integer inputs).
    r = jnp.maximum(x, jnp.zeros((), dtype=x.dtype))
    return r * r


def _squared_relu_kernel(x_ref, o_ref):
    x = x_ref[...]
    r = jnp.maximum(x, jnp.zeros((), dtype=x.dtype))
    o_ref[...] = r * r


def _round_up(v: int, m: int) -> int:
    return ((v + m - 1) // m) * m


def squared_relu(
    x: jax.Array,
    *,
    tile_rows: int = 4096,
    donate_input: bool = False,
) -> jax.Array:
    """Apply squared ReLU elementwise to an arbitrary-shape array.

    Args:
      x: input array (any shape / float or int dtype).
      tile_rows: rows (of 128 lanes) per streamed block; multiple of 32.
      donate_input: set True only when `x` is a dead temporary (e.g. inside a
        jit) — aliases the output onto the input HBM buffer.
    """
    orig_shape = x.shape
    n = x.size
    itemsize = jnp.dtype(x.dtype).itemsize
    nbytes = n * itemsize

    # Tiny-input fast path: launch overhead + lost XLA fusion dominate.
    if nbytes <= _FAST_PATH_MAX_BYTES:
        return _squared_relu_ref(x)

    # Non-lane-aligned sizes: never pad/slice around the kernel (each would be
    # a full extra HBM copy on a purely bandwidth-bound op).
    if n % _LANES != 0:
        return _squared_relu_ref(x)

    rows = n // _LANES
    x2d = x.reshape(rows, _LANES)

    if rows <= _SINGLE_BLOCK_MAX_ROWS:
        # Small/medium input: one block covering the whole array (block ==
        # full dims, so no (8,128) divisibility requirement; no per-step
        # overhead).
        block_rows = rows
        grid = (1,)
    else:
        # Large input: stream blocks, guaranteeing >= 2 blocks so both v7x
        # TensorCores get work, capped at tile_rows (2 MiB f32 default).
        half = _round_up(pl.cdiv(rows, 2), _SUBLANE_MULTIPLE)
        block_rows = min(tile_rows, half)
        grid = (pl.cdiv(rows, block_rows),)

    # Double-buffered in+out footprint, with slack; clamp to sane scoped-VMEM
    # requests for every generation (v7x physical VMEM is 64 MiB per TC).
    block_bytes = block_rows * _LANES * itemsize
    vmem_limit = min(max(4 * block_bytes + (1 << 20), 16 << 20), 64 << 20)

    extra_kwargs = {}
    if donate_input:
        extra_kwargs["input_output_aliases"] = {0: 0}

    out2d = pl.pallas_call(
        _squared_relu_kernel,
        out_shape=jax.ShapeDtypeStruct((rows, _LANES), x.dtype),
        grid=grid,
        in_specs=[pl.BlockSpec((block_rows, _LANES), lambda i: (i, 0))],
        out_specs=pl.BlockSpec((block_rows, _LANES), lambda i: (i, 0)),
        compiler_params=pltpu.CompilerParams(
            dimension_semantics=("parallel",),
            vmem_limit_bytes=vmem_limit,
        ),
        cost_estimate=pl.CostEstimate(
            flops=2 * n,                 # max + mul per element
            transcendentals=0,
            bytes_accessed=2 * nbytes,   # read x + write y
        ),
        **extra_kwargs,
    )(x2d)

    return out2d.reshape(orig_shape)


if __name__ == "__main__":
    key = jax.random.PRNGKey(0)
    k1, k2, k3 = jax.random.split(key, 3)

    # 1) The module's nominal small NCHW input (8 KiB -> XLA-fused fast path).
    x_small = jax.random.normal(k1, (2, 4, 16, 16), dtype=jnp.float32)
    # 2) Lane-aligned 128 KiB input -> single-block Pallas path, grid=(1,).
    x_mid = jax.random.normal(k2, (2, 8, 32, 64), dtype=jnp.float32)
    # 3) 2 MiB input -> multi-block Pallas path, grid=(2,), "parallel" axis.
    x_big = jax.random.normal(k3, (4, 8, 128, 128), dtype=jnp.float32)

    for x in (x_small, x_mid, x_big):
        y = squared_relu(x)
        jax.block_until_ready(y)
        y_ref = jnp.square(jnp.maximum(x, 0.0))
        assert y.shape == x.shape and y.dtype == x.dtype
        assert jnp.allclose(y, y_ref, atol=1e-6, rtol=1e-6)

    print("KERNEL_OK")
</pallas_src>

<mosaic_0001>
module attributes {stable_mosaic.version = 11 : i64} {
  func.func @_squared_relu_kernel(%arg0: i32, %arg1: memref<256x128xf32, #tpu.memory_space<vmem>>, %arg2: memref<256x128xf32, #tpu.memory_space<vmem>>) attributes {dimension_semantics = [#tpu.dimension_semantics<parallel>], iteration_bounds = array<i64: 1>, scalar_prefetch = 0 : i64, scratch_operands = 0 : i64, tpu.core_type = #tpu.core_type<tc>, window_params = [{transform_indices = @transform_0, window_bounds = array<i64: 256, 128>}, {transform_indices = @transform_1, window_bounds = array<i64: 256, 128>}]} {
    %c0 = arith.constant 0 : index
    %c0_0 = arith.constant 0 : index
    %0 = vector.load %arg1[%c0, %c0_0] : memref<256x128xf32, #tpu.memory_space<vmem>>, vector<256x128xf32>
    %cst = arith.constant 0.000000e+00 : f32
    %1 = vector.broadcast %cst : f32 to vector<256x128xf32>
    %2 = arith.maximumf %0, %1 : vector<256x128xf32>
    %3 = arith.mulf %2, %2 : vector<256x128xf32>
    %c0_1 = arith.constant 0 : index
    %c0_2 = arith.constant 0 : index
    %4 = vector.load %arg2[%c0_1, %c0_2] : memref<256x128xf32, #tpu.memory_space<vmem>>, vector<256x128xf32>
    tpu.vector_store %arg2[%c0_1, %c0_2], %3 {strides = array<i32>} : memref<256x128xf32, #tpu.memory_space<vmem>>, vector<256x128xf32>,
    return
  }
  func.func @transform_0(%arg0: i32) -> (i32, i32) {
    %c0_i32 = arith.constant 0 : i32
    %c0_i32_0 = arith.constant 0 : i32
    return %arg0, %c0_i32 : i32, i32
  }
  func.func @transform_1(%arg0: i32) -> (i32, i32) {
    %c0_i32 = arith.constant 0 : i32
    %c0_i32_0 = arith.constant 0 : i32
    return %arg0, %c0_i32 : i32, i32
  }
}

</mosaic_0001>

<llo_original>
// kernel: tpu_custom_call.1
$region0: #{tpu_custom_call.1}
  #allocation0 [shape = 'u32[]', space=smem, size = 0x4, offset = 0x4, fixed_abs, tag = 'smem constant byte address 0x4 - core index']
  #allocation1 [shape = 'u32[144,128]{1,0:T(1,128)}', space=vmem, size = 0x12000, scoped, tag = 'internal scratch']
  %s0 = inlined_call_operand.hbm [shape: f32[256,128], index: 0, kind: input, shape index: {}]
  %s1 = inlined_call_operand.hbm [shape: f32[256,128], index: 1, kind: output, shape index: {}]
  %s2 = sld [smem:[#allocation0]]
  $region18: #{tpu_custom_call.1} parent=0
    _
  %s4 = ssub.s32 1, %s2
  %s5 = scalar_select 0, %s4, %s2
  $region1: #{tpu_custom_call.1} parent=0
    #allocation2 [shape = 'u8[131072]{0}', space=vmem, size = 0x20000, scoped, tag = 'input window, operand 0, single buffered']
    #allocation3 [shape = 's32[1]{0}', space=sflag, size = 0x4, scoped, tag = 'scoped memory for tpu_custom_call.1']
    #allocation4 [shape = 's32[1]{0}', space=sflag, size = 0x4, scoped, tag = 'scoped memory for tpu_custom_call.1']
    #allocation5 [shape = 'u8[131072]{0}', space=vmem, size = 0x20000, scoped, tag = 'output window, operand 0, single buffered']
    %6 = vsyncpa [#allocation3], 0
    %7 = vsyncpa [#allocation4], 0
    // Predicated region
    $region2: #{tpu_custom_call.1} parent=1 // pred_check
      _
    $region3: #{tpu_custom_call.1} parent=1 // pred_check_branch
      %9 = sbr.rel (0) target = $region5
    $region4: #{tpu_custom_call.1} parent=1 // pred_region
      %s11 = ssub.s32 4096, 4096
      %12 = vsyncadd [#allocation3], %s11
      %s13 = sshll.u32 [#allocation2], 4
      %s14 = int_to_ptr.vmem [resolvable:$true] %s13
      %19 = dma.hbm_to_vmem [thread:$0]  %s0, 4096, %s14, [#allocation3], 128, 128, 8
    $region5: #{tpu_custom_call.1} parent=1 // pred_fallthru
      _
    // Predicated region
    $region6: #{tpu_custom_call.1} parent=1 // pred_check
      _
    $region7: #{tpu_custom_call.1} parent=1 // pred_check_branch
      %21 = sbr.rel (0) target = $region9
    $region8: #{tpu_custom_call.1} parent=1 // pred_region
      %22 = dma.done [#allocation3], 4096
    $region9: #{tpu_custom_call.1} parent=1 // pred_fallthru
      _
    %v23 = vld [vmem:[#allocation2] sm:$0xff]
    %v24 = vld [vmem:[#allocation2 + $0x8] sm:$0xff]
    %v25 = vld [vmem:[#allocation2 + $0x10] sm:$0xff]
    %v26 = vld [vmem:[#allocation2 + $0x18] sm:$0xff]
    %v27 = vld [vmem:[#allocation2 + $0x20] sm:$0xff]
    %v28 = vld [vmem:[#allocation2 + $0x28] sm:$0xff]
    %v29 = vld [vmem:[#allocation2 + $0x30] sm:$0xff]
    %v30 = vld [vmem:[#allocation2 + $0x38] sm:$0xff]
    %v31 = vld [vmem:[#allocation2 + $0x40] sm:$0xff]
    %v32 = vld [vmem:[#allocation2 + $0x48] sm:$0xff]
    %v33 = vld [vmem:[#allocation2 + $0x50] sm:$0xff]
    %v34 = vld [vmem:[#allocation2 + $0x58] sm:$0xff]
    %v35 = vld [vmem:[#allocation2 + $0x60] sm:$0xff]
    %v36 = vld [vmem:[#allocation2 + $0x68] sm:$0xff]
    %v37 = vld [vmem:[#allocation2 + $0x70] sm:$0xff]
    %v38 = vld [vmem:[#allocation2 + $0x78] sm:$0xff]
    %v39 = vld [vmem:[#allocation2 + $0x80] sm:$0xff]
    %v40 = vld [vmem:[#allocation2 + $0x88] sm:$0xff]
    %v41 = vld [vmem:[#allocation2 + $0x90] sm:$0xff]
    %v42 = vld [vmem:[#allocation2 + $0x98] sm:$0xff]
    %v43 = vld [vmem:[#allocation2 + $0xa0] sm:$0xff]
    %v44 = vld [vmem:[#allocation2 + $0xa8] sm:$0xff]
    %v45 = vld [vmem:[#allocation2 + $0xb0] sm:$0xff]
    %v46 = vld [vmem:[#allocation2 + $0xb8] sm:$0xff]
    %v47 = vld [vmem:[#allocation2 + $0xc0] sm:$0xff]
    %v48 = vld [vmem:[#allocation2 + $0xc8] sm:$0xff]
    %v49 = vld [vmem:[#allocation2 + $0xd0] sm:$0xff]
    %v50 = vld [vmem:[#allocation2 + $0xd8] sm:$0xff]
    %v51 = vld [vmem:[#allocation2 + $0xe0] sm:$0xff]
    %v52 = vld [vmem:[#allocation2 + $0xe8] sm:$0xff]
    %v53 = vld [vmem:[#allocation2 + $0xf0] sm:$0xff]
    %v54 = vld [vmem:[#allocation2 + $0xf8] sm:$0xff]
    %v55 = vmax.f32 %v23, 0.0
    %v56 = vmax.f32 %v24, 0.0
    %v57 = vmax.f32 %v25, 0.0
    %v58 = vmax.f32 %v26, 0.0
    %v59 = vmax.f32 %v27, 0.0
    %v60 = vmax.f32 %v28, 0.0
    %v61 = vmax.f32 %v29, 0.0
    %v62 = vmax.f32 %v30, 0.0
    %v63 = vmax.f32 %v31, 0.0
    %v64 = vmax.f32 %v32, 0.0
    %v65 = vmax.f32 %v33, 0.0
    %v66 = vmax.f32 %v34, 0.0
    %v67 = vmax.f32 %v35, 0.0
    %v68 = vmax.f32 %v36, 0.0
    %v69 = vmax.f32 %v37, 0.0
    %v70 = vmax.f32 %v38, 0.0
    %v71 = vmax.f32 %v39, 0.0
    %v72 = vmax.f32 %v40, 0.0
    %v73 = vmax.f32 %v41, 0.0
    %v74 = vmax.f32 %v42, 0.0
    %v75 = vmax.f32 %v43, 0.0
    %v76 = vmax.f32 %v44, 0.0
    %v77 = vmax.f32 %v45, 0.0
    %v78 = vmax.f32 %v46, 0.0
    %v79 = vmax.f32 %v47, 0.0
    %v80 = vmax.f32 %v48, 0.0
    %v81 = vmax.f32 %v49, 0.0
    %v82 = vmax.f32 %v50, 0.0
    %v83 = vmax.f32 %v51, 0.0
    %v84 = vmax.f32 %v52, 0.0
    %v85 = vmax.f32 %v53, 0.0
    %v86 = vmax.f32 %v54, 0.0
    %v87 = vmul.f32 %v55, %v55
    %v88 = vmul.f32 %v56, %v56
    %v89 = vmul.f32 %v57, %v57
    %v90 = vmul.f32 %v58, %v58
    %v91 = vmul.f32 %v59, %v59
    %v92 = vmul.f32 %v60, %v60
    %v93 = vmul.f32 %v61, %v61
    %v94 = vmul.f32 %v62, %v62
    %v95 = vmul.f32 %v63, %v63
    %v96 = vmul.f32 %v64, %v64
    %v97 = vmul.f32 %v65, %v65
    %v98 = vmul.f32 %v66, %v66
    %v99 = vmul.f32 %v67, %v67
    %v100 = vmul.f32 %v68, %v68
    %v101 = vmul.f32 %v69, %v69
    %v102 = vmul.f32 %v70, %v70
    %v103 = vmul.f32 %v71, %v71
    %v104 = vmul.f32 %v72, %v72
    %v105 = vmul.f32 %v73, %v73
    %v106 = vmul.f32 %v74, %v74
    %v107 = vmul.f32 %v75, %v75
    %v108 = vmul.f32 %v76, %v76
    %v109 = vmul.f32 %v77, %v77
    %v110 = vmul.f32 %v78, %v78
    %v111 = vmul.f32 %v79, %v79
    %v112 = vmul.f32 %v80, %v80
    %v113 = vmul.f32 %v81, %v81
    %v114 = vmul.f32 %v82, %v82
    %v115 = vmul.f32 %v83, %v83
    %v116 = vmul.f32 %v84, %v84
    %v117 = vmul.f32 %v85, %v85
    %v118 = vmul.f32 %v86, %v86
    %119 = vst [vmem:[#allocation5] sm:$0xff] %v87
    %120 = vst [vmem:[#allocation5 + $0x8] sm:$0xff] %v88
    %121 = vst [vmem:[#allocation5 + $0x10] sm:$0xff] %v89
    %122 = vst [vmem:[#allocation5 + $0x18] sm:$0xff] %v90
    %123 = vst [vmem:[#allocation5 + $0x20] sm:$0xff] %v91
    %124 = vst [vmem:[#allocation5 + $0x28] sm:$0xff] %v92
    %125 = vst [vmem:[#allocation5 + $0x30] sm:$0xff] %v93
    %126 = vst [vmem:[#allocation5 + $0x38] sm:$0xff] %v94
    %127 = vst [vmem:[#allocation5 + $0x40] sm:$0xff] %v95
    %128 = vst [vmem:[#allocation5 + $0x48] sm:$0xff] %v96
    %129 = vst [vmem:[#allocation5 + $0x50] sm:$0xff] %v97
    %130 = vst [vmem:[#allocation5 + $0x58] sm:$0xff] %v98
    %131 = vst [vmem:[#allocation5 + $0x60] sm:$0xff] %v99
    %132 = vst [vmem:[#allocation5 + $0x68] sm:$0xff] %v100
    %133 = vst [vmem:[#allocation5 + $0x70] sm:$0xff] %v101
    %134 = vst [vmem:[#allocation5 + $0x78] sm:$0xff] %v102
    %135 = vst [vmem:[#allocation5 + $0x80] sm:$0xff] %v103
    %136 = vst [vmem:[#allocation5 + $0x88] sm:$0xff] %v104
    %137 = vst [vmem:[#allocation5 + $0x90] sm:$0xff] %v105
    %138 = vst [vmem:[#allocation5 + $0x98] sm:$0xff] %v106
    %139 = vst [vmem:[#allocation5 + $0xa0] sm:$0xff] %v107
    %140 = vst [vmem:[#allocation5 + $0xa8] sm:$0xff] %v108
    %141 = vst [vmem:[#allocation5 + $0xb0] sm:$0xff] %v109
    %142 = vst [vmem:[#allocation5 + $0xb8] sm:$0xff] %v110
    %143 = vst [vmem:[#allocation5 + $0xc0] sm:$0xff] %v111
    %144 = vst [vmem:[#allocation5 + $0xc8] sm:$0xff] %v112
    %145 = vst [vmem:[#allocation5 + $0xd0] sm:$0xff] %v113
    %146 = vst [vmem:[#allocation5 + $0xd8] sm:$0xff] %v114
    %147 = vst [vmem:[#allocation5 + $0xe0] sm:$0xff] %v115
    %148 = vst [vmem:[#allocation5 + $0xe8] sm:$0xff] %v116
    %149 = vst [vmem:[#allocation5 + $0xf0] sm:$0xff] %v117
    %150 = vst [vmem:[#allocation5 + $0xf8] sm:$0xff] %v118
    // Predicated region
    $region10: #{tpu_custom_call.1} parent=1 // pred_check
      _
    $region11: #{tpu_custom_call.1} parent=1 // pred_check_branch
      %152 = sbr.rel (0) target = $region13
    $region12: #{tpu_custom_call.1} parent=1 // pred_region
      %s154 = ssub.s32 4096, 4096
      %155 = vsyncadd [#allocation4], %s154
      %s156 = sshll.u32 [#allocation5], 4
      %s157 = int_to_ptr.vmem [resolvable:$true] %s156
      %162 = dma.vmem_to_hbm [thread:$0]  %s157, 4096, %s1, [#allocation4], 128, 128, 8
    $region13: #{tpu_custom_call.1} parent=1 // pred_fallthru
      _
    // Predicated region
    $region14: #{tpu_custom_call.1} parent=1 // pred_check
      _
    $region15: #{tpu_custom_call.1} parent=1 // pred_check_branch
      %164 = sbr.rel (0) target = $region17
    $region16: #{tpu_custom_call.1} parent=1 // pred_region
      %165 = dma.done [#allocation4], 4096
    $region17: #{tpu_custom_call.1} parent=1 // pred_fallthru
      _
    %166 = vsyncpa [#allocation3], 1
    %167 = vsyncpa [#allocation4], 1

</llo_original>
